<compile_context>
chip_gen: v7x
topology: tpu7x:2x2x1
jax: 0.10.0
libtpu: 0.0.40
codegen_flags: <defaults>
</compile_context>

<pallas_src>
import math
import functools

import jax
import jax.numpy as jnp
from jax.experimental import pallas as pl
from jax.experimental.pallas import tpu as pltpu


_COMPUTE_DTYPE = jnp.bfloat16   # MXU-native on v5e/v6e/v7x


# ----------------------------------------------------------------------------
# Generation-aware VMEM budget (v7x: 64 MiB physical -> ~48 MiB; v5e/v6e: 96 MiB)
# ----------------------------------------------------------------------------
def _vmem_limit_bytes():
    cap = 128 * 1024 * 1024
    try:
        info = pltpu.get_tpu_info()
        cap = int(getattr(info, "vmem_capacity_bytes", cap))
    except Exception:
        pass
    return int(min(cap * 3 // 4, 96 * 1024 * 1024))


def _round_up(x, m):
    return (x + m - 1) // m * m


def _pick_tile(dim, desired, granule):
    """Return (tile, padded_dim) satisfying the TPU block rules."""
    desired = max(granule, (desired // granule) * granule)
    if dim <= desired:
        return dim, dim                     # full-dim block is always legal
    return desired, _round_up(dim, desired)


def _attn_tile(dim, desired, granule):
    """Largest granule-multiple divisor of `dim` not exceeding `desired`."""
    if dim <= desired:
        return dim
    t = (desired // granule) * granule
    while t >= granule:
        if dim % t == 0:
            return t
        t -= granule
    return dim


# ----------------------------------------------------------------------------
# Tiled linear projection:  y = x @ W   (W stored in (K, N) layout, bf16)
# ----------------------------------------------------------------------------
def _linear_kernel(x_ref, w_ref, o_ref, acc_ref):
    @pl.when(pl.program_id(2) == 0)
    def _():
        acc_ref[...] = jnp.zeros_like(acc_ref)

    acc_ref[...] += jnp.dot(x_ref[...], w_ref[...],
                            preferred_element_type=jnp.float32)

    @pl.when(pl.program_id(2) == pl.num_programs(2) - 1)
    def _():
        o_ref[...] = acc_ref[...].astype(o_ref.dtype)


def pallas_linear(x, w_kn, *, tm=512, tn=512, tk=1024, out_dtype=None):
    """y = x @ w_kn ;  x: (M, K), w_kn: (K, N)."""
    M, K = x.shape
    K2, N = w_kn.shape
    assert K == K2
    if out_dtype is None:
        out_dtype = x.dtype

    # bf16 MXU operands, f32 accumulation.
    x = x.astype(_COMPUTE_DTYPE)
    w = w_kn.astype(_COMPUTE_DTYPE)

    tm, Mp = _pick_tile(M, tm, 16)     # sublane granule 16 for packed bf16
    tn, Np = _pick_tile(N, tn, 128)
    tk, Kp = _pick_tile(K, tk, 128)

    # Padding only triggers for non-tile-aligned dims (weights are expected to
    # already be tile-aligned / prepared at init -> no per-forward weight copy).
    if (Mp, Kp) != (M, K):
        x = jnp.pad(x, ((0, Mp - M), (0, Kp - K)))
    if (Kp, Np) != (K, N):
        w = jnp.pad(w, ((0, Kp - K), (0, Np - N)))

    grid = (Mp // tm, Np // tn, Kp // tk)
    out_isz = jnp.dtype(out_dtype).itemsize

    y = pl.pallas_call(
        _linear_kernel,
        out_shape=jax.ShapeDtypeStruct((Mp, Np), out_dtype),
        grid_spec=pltpu.PrefetchScalarGridSpec(
            num_scalar_prefetch=0,
            grid=grid,
            in_specs=[
                pl.BlockSpec((tm, tk), lambda i, j, k: (i, k)),
                pl.BlockSpec((tk, tn), lambda i, j, k: (k, j)),
            ],
            out_specs=pl.BlockSpec((tm, tn), lambda i, j, k: (i, j)),
            scratch_shapes=[pltpu.VMEM((tm, tn), jnp.float32)],
        ),
        compiler_params=pltpu.CompilerParams(
            dimension_semantics=("parallel", "parallel", "arbitrary"),
            vmem_limit_bytes=_vmem_limit_bytes(),
        ),
        cost_estimate=pl.CostEstimate(
            flops=2 * Mp * Np * Kp,
            transcendentals=0,
            bytes_accessed=(Mp * Kp + Kp * Np) * 2 + Mp * Np * out_isz,
        ),
    )(x, w)

    if (Mp, Np) != (M, N):
        y = y[:M, :N]
    return y


# ----------------------------------------------------------------------------
# Flash-style GQA attention (production path, no attention-weights output).
#   Q: (B, Hkv, G*Sq, d_k)   K: (B, Hkv, d_k, Sk)   V: (B, Hkv, Sk, d_k)
#   softmax scale already folded into Q (via w_q at init).
# ----------------------------------------------------------------------------
def _flash_attn_kernel(q_ref, k_ref, v_ref, o_ref, m_ref, l_ref, acc_ref):
    ki = pl.program_id(3)

    @pl.when(ki == 0)
    def _():
        m_ref[...] = jnp.full(m_ref.shape, -jnp.inf, jnp.float32)
        l_ref[...] = jnp.zeros_like(l_ref)
        acc_ref[...] = jnp.zeros_like(acc_ref)

    # (tq, d_k) @ (d_k, tkv) -> (tq, tkv), f32 on the MXU.
    s = jnp.dot(q_ref[...], k_ref[...], preferred_element_type=jnp.float32)

    m_prev = m_ref[...]
    m_new = jnp.maximum(m_prev, jnp.max(s, axis=-1, keepdims=True))
    alpha = jnp.exp(m_prev - m_new)
    p = jnp.exp(s - m_new)
    l_ref[...] = alpha * l_ref[...] + jnp.sum(p, axis=-1, keepdims=True)
    acc_ref[...] = alpha * acc_ref[...] + jnp.dot(
        p.astype(v_ref.dtype), v_ref[...], preferred_element_type=jnp.float32)
    m_ref[...] = m_new

    @pl.when(ki == pl.num_programs(3) - 1)
    def _():
        inv_l = pl.reciprocal(l_ref[...], approx=True)     # EUP slot
        o_ref[...] = (acc_ref[...] * inv_l).astype(o_ref.dtype)


def pallas_gqa_flash_attention(Q, K, V, *, tq=256, tkv=256):
    B, Hkv, Mq, d_k = Q.shape
    Sk = K.shape[-1]
    assert K.shape == (B, Hkv, d_k, Sk)
    assert V.shape == (B, Hkv, Sk, d_k)

    tq = _attn_tile(Mq, tq, 16)
    tkv = _attn_tile(Sk, tkv, 128)
    grid = (B, Hkv, Mq // tq, Sk // tkv)
    isz = jnp.dtype(Q.dtype).itemsize

    return pl.pallas_call(
        _flash_attn_kernel,
        out_shape=jax.ShapeDtypeStruct((B, Hkv, Mq, d_k), Q.dtype),
        grid_spec=pltpu.PrefetchScalarGridSpec(
            num_scalar_prefetch=0,
            grid=grid,
            in_specs=[
                pl.BlockSpec((None, None, tq, d_k), lambda b, h, qi, ki: (b, h, qi, 0)),
                pl.BlockSpec((None, None, d_k, tkv), lambda b, h, qi, ki: (b, h, 0, ki)),
                pl.BlockSpec((None, None, tkv, d_k), lambda b, h, qi, ki: (b, h, ki, 0)),
            ],
            out_specs=pl.BlockSpec((None, None, tq, d_k),
                                   lambda b, h, qi, ki: (b, h, qi, 0)),
            scratch_shapes=[
                pltpu.VMEM((tq, 1), jnp.float32),     # running max m
                pltpu.VMEM((tq, 1), jnp.float32),     # running sum l
                pltpu.VMEM((tq, d_k), jnp.float32),   # output accumulator
            ],
        ),
        compiler_params=pltpu.CompilerParams(
            dimension_semantics=("parallel", "parallel", "parallel", "arbitrary"),
            vmem_limit_bytes=_vmem_limit_bytes(),
        ),
        cost_estimate=pl.CostEstimate(
            flops=4 * B * Hkv * Mq * Sk * d_k,
            transcendentals=B * Hkv * Mq * Sk,
            bytes_accessed=(Q.size + K.size + V.size + B * Hkv * Mq * d_k) * isz,
        ),
    )(Q, K, V)


# ----------------------------------------------------------------------------
# GQA attention that also returns the full attention weights (PyTorch parity).
# Tiled over query rows only; exact softmax divide for the returned weights.
# ----------------------------------------------------------------------------
def _attn_weights_kernel(q_ref, k_ref, v_ref, o_ref, w_ref):
    s = jnp.dot(q_ref[...], k_ref[...], preferred_element_type=jnp.float32)  # (tq, Sk)
    m = jnp.max(s, axis=-1, keepdims=True)
    e = jnp.exp(s - m)
    attn = e / jnp.sum(e, axis=-1, keepdims=True)       # exact: rows sum to 1
    o_ref[...] = jnp.dot(attn.astype(v_ref.dtype), v_ref[...],
                         preferred_element_type=jnp.float32).astype(o_ref.dtype)
    w_ref[...] = attn.astype(w_ref.dtype)


def pallas_gqa_attention_with_weights(Q, K, V, *, tq=256):
    B, Hkv, Mq, d_k = Q.shape
    Sk = K.shape[-1]
    assert K.shape == (B, Hkv, d_k, Sk)
    assert V.shape == (B, Hkv, Sk, d_k)

    tq = _attn_tile(Mq, tq, 16)
    grid = (B, Hkv, Mq // tq)
    isz = jnp.dtype(Q.dtype).itemsize

    out, attn = pl.pallas_call(
        _attn_weights_kernel,
        out_shape=(
            jax.ShapeDtypeStruct((B, Hkv, Mq, d_k), Q.dtype),
            jax.ShapeDtypeStruct((B, Hkv, Mq, Sk), jnp.float32),
        ),
        grid_spec=pltpu.PrefetchScalarGridSpec(
            num_scalar_prefetch=0,
            grid=grid,
            in_specs=[
                pl.BlockSpec((None, None, tq, d_k), lambda b, h, qi: (b, h, qi, 0)),
                pl.BlockSpec((None, None, d_k, Sk), lambda b, h, qi: (b, h, 0, 0)),
                pl.BlockSpec((None, None, Sk, d_k), lambda b, h, qi: (b, h, 0, 0)),
            ],
            out_specs=[
                pl.BlockSpec((None, None, tq, d_k), lambda b, h, qi: (b, h, qi, 0)),
                pl.BlockSpec((None, None, tq, Sk), lambda b, h, qi: (b, h, qi, 0)),
            ],
        ),
        compiler_params=pltpu.CompilerParams(
            dimension_semantics=("parallel", "parallel", "parallel"),
            vmem_limit_bytes=_vmem_limit_bytes(),
        ),
        cost_estimate=pl.CostEstimate(
            flops=4 * B * Hkv * Mq * Sk * d_k,
            transcendentals=B * Hkv * Mq * Sk,
            bytes_accessed=(Q.size + K.size + V.size + B * Hkv * Mq * d_k) * isz
                           + B * Hkv * Mq * Sk * 4,
        ),
    )(Q, K, V)
    return out, attn


# ----------------------------------------------------------------------------
# Parameter init + forward wrapper
# ----------------------------------------------------------------------------
def init_gqa_params(key, d_model, num_query_heads, num_kv_heads):
    """Weights stored bf16 in (in_features, out_features) layout; the 1/sqrt(d_k)
    softmax scale is folded into w_q (and the Q rows of w_qkv) at init."""
    assert d_model % num_query_heads == 0
    assert num_query_heads % num_kv_heads == 0
    d_k = d_model // num_query_heads
    dkv = num_kv_heads * d_k
    scale = 1.0 / math.sqrt(d_k)
    kq, kk, kv, ko = jax.random.split(key, 4)
    s = 1.0 / math.sqrt(d_model)

    w_q = jax.random.uniform(kq, (d_model, d_model), jnp.float32, -s, s) * scale
    w_k = jax.random.uniform(kk, (d_model, dkv), jnp.float32, -s, s)
    w_v = jax.random.uniform(kv, (d_model, dkv), jnp.float32, -s, s)
    w_o = jax.random.uniform(ko, (d_model, d_model), jnp.float32, -s, s)

    params = {
        "w_q": w_q.astype(_COMPUTE_DTYPE),
        "w_k": w_k.astype(_COMPUTE_DTYPE),
        "w_v": w_v.astype(_COMPUTE_DTYPE),
        "w_o": w_o.astype(_COMPUTE_DTYPE),
        # Pre-fused [Wq|Wk|Wv] so the self-attention fast path does one GEMM.
        "w_qkv": jnp.concatenate([w_q, w_k, w_v], axis=1).astype(_COMPUTE_DTYPE),
    }
    return params


def gqa_forward(params, query, key, value, num_query_heads, num_kv_heads,
                mask=None, return_weights=True):
    # TODO(synk): mask and attention-dropout paths not implemented (eval-mode identity).
    assert mask is None, "mask path not implemented"
    B, Sq, D = query.shape
    Sk = key.shape[1]
    d_k = D // num_query_heads
    G = num_query_heads // num_kv_heads
    Dkv = num_kv_heads * d_k
    out_dtype = query.dtype
    cdt = _COMPUTE_DTYPE

    if (query is key) and (key is value):
        # Self-attention fast path: single fused QKV GEMM (activation read once).
        qkv = pallas_linear(query.reshape(B * Sq, D).astype(cdt),
                            params["w_qkv"], out_dtype=cdt)
        q = qkv[:, :D]
        k = qkv[:, D:D + Dkv]
        v = qkv[:, D + Dkv:]
    else:
        q = pallas_linear(query.reshape(B * Sq, D).astype(cdt), params["w_q"], out_dtype=cdt)
        k = pallas_linear(key.reshape(B * Sk, D).astype(cdt), params["w_k"], out_dtype=cdt)
        v = pallas_linear(value.reshape(B * Sk, D).astype(cdt), params["w_v"], out_dtype=cdt)

    # TODO(synk): fold these head transposes into the attention BlockSpec index_maps.
    # Q: all G query heads sharing a KV head are stacked along the MXU M dim.
    Qr = (q.reshape(B, Sq, num_kv_heads, G, d_k)
           .transpose(0, 2, 3, 1, 4)
           .reshape(B, num_kv_heads, G * Sq, d_k))            # (B, Hkv, G*Sq, d_k)
    Kr = k.reshape(B, Sk, num_kv_heads, d_k).transpose(0, 2, 3, 1)  # (B, Hkv, d_k, Sk)
    Vr = v.reshape(B, Sk, num_kv_heads, d_k).transpose(0, 2, 1, 3)  # (B, Hkv, Sk, d_k)

    if return_weights:
        attn_out, attn_w = pallas_gqa_attention_with_weights(Qr, Kr, Vr)
        attn_w = attn_w.reshape(B, num_query_heads, Sq, Sk)
    else:
        attn_out = pallas_gqa_flash_attention(Qr, Kr, Vr)
        attn_w = None

    attn_out = (attn_out.reshape(B, num_kv_heads, G, Sq, d_k)
                        .transpose(0, 3, 1, 2, 4)
                        .reshape(B * Sq, D))
    out = pallas_linear(attn_out.astype(cdt), params["w_o"],
                        out_dtype=out_dtype).reshape(B, Sq, D)
    return out, attn_w


# ----------------------------------------------------------------------------
# Pure-JAX reference (PyTorch forward math; 1/sqrt(d_k) is folded into w_q)
# ----------------------------------------------------------------------------
def gqa_reference(params, query, key, value, num_query_heads, num_kv_heads):
    B, Sq, D = query.shape
    Sk = key.shape[1]
    d_k = D // num_query_heads
    G = num_query_heads // num_kv_heads
    f32 = jnp.float32
    wq, wk, wv, wo = (params["w_q"].astype(f32), params["w_k"].astype(f32),
                      params["w_v"].astype(f32), params["w_o"].astype(f32))

    Q = (query @ wq).reshape(B, Sq, num_query_heads, d_k).transpose(0, 2, 1, 3)
    K = (key @ wk).reshape(B, Sk, num_kv_heads, d_k).transpose(0, 2, 1, 3)
    V = (value @ wv).reshape(B, Sk, num_kv_heads, d_k).transpose(0, 2, 1, 3)
    K = jnp.repeat(K, G, axis=1)
    V = jnp.repeat(V, G, axis=1)

    scores = jnp.einsum("bhqd,bhkd->bhqk", Q, K)     # scale already inside wq
    attn = jax.nn.softmax(scores, axis=-1)
    out = jnp.einsum("bhqk,bhkd->bhqd", attn, V)
    out = out.transpose(0, 2, 1, 3).reshape(B, Sq, D)
    out = out @ wo
    return out, attn


# ----------------------------------------------------------------------------
if __name__ == "__main__":
    B = 2
    S = 8
    d_model = 32
    num_query_heads = 4
    num_kv_heads = 2

    root = jax.random.PRNGKey(0)
    kp, kq, kk, kv, kf = jax.random.split(root, 5)

    params = init_gqa_params(kp, d_model, num_query_heads, num_kv_heads)
    query = jax.random.normal(kq, (B, S, d_model), jnp.float32)
    key = jax.random.normal(kk, (B, S, d_model), jnp.float32)
    value = jax.random.normal(kv, (B, S, d_model), jnp.float32)

    # (1) Linear GEMM: multi-block grid + K-reduction, tile-aligned dims.
    xa = jax.random.normal(jax.random.PRNGKey(1), (256, 512), jnp.float32)
    wa = jax.random.normal(jax.random.PRNGKey(2), (512, 384), jnp.float32) * 0.05
    ya = jax.block_until_ready(pallas_linear(xa, wa, tm=128, tn=128, tk=256))
    ya_ref = jnp.dot(xa.astype(jnp.bfloat16), wa.astype(jnp.bfloat16),
                     preferred_element_type=jnp.float32)
    assert jnp.allclose(ya, ya_ref, atol=5e-2, rtol=5e-2), "linear (tiled) mismatch"

    # (2) Linear GEMM: padding path (dims not tile-aligned).
    xb = jax.random.normal(jax.random.PRNGKey(3), (192, 320), jnp.float32)
    wb = jax.random.normal(jax.random.PRNGKey(4), (320, 160), jnp.float32) * 0.05
    yb = jax.block_until_ready(pallas_linear(xb, wb, tm=128, tn=128, tk=128))
    yb_ref = jnp.dot(xb.astype(jnp.bfloat16), wb.astype(jnp.bfloat16),
                     preferred_element_type=jnp.float32)
    assert jnp.allclose(yb, yb_ref, atol=5e-2, rtol=5e-2), "linear (padded) mismatch"

    # (3) Flash attention kernel: multi-tile online softmax over Sk.
    Bq, Hkv_t, G_t, Sq_t, Sk_t, dk_t = 1, 2, 2, 128, 256, 128
    kq1, kk1, kv1 = jax.random.split(kf, 3)
    Qf = (jax.random.normal(kq1, (Bq, Hkv_t, G_t * Sq_t, dk_t), jnp.float32)
          / math.sqrt(dk_t)).astype(jnp.bfloat16)
    Kf = jax.random.normal(kk1, (Bq, Hkv_t, dk_t, Sk_t), jnp.float32).astype(jnp.bfloat16)
    Vf = jax.random.normal(kv1, (Bq, Hkv_t, Sk_t, dk_t), jnp.float32).astype(jnp.bfloat16)
    of = jax.block_until_ready(pallas_gqa_flash_attention(Qf, Kf, Vf, tq=128, tkv=128))
    sf = jnp.einsum("bhmd,bhdk->bhmk", Qf.astype(jnp.float32), Kf.astype(jnp.float32))
    pf = jax.nn.softmax(sf, axis=-1)
    of_ref = jnp.einsum("bhmk,bhkd->bhmd", pf, Vf.astype(jnp.float32))
    assert jnp.allclose(of.astype(jnp.float32), of_ref, atol=2e-2, rtol=2e-2), \
        "flash attention mismatch"

    # (4) Full GQA forward (cross-attention), with attention weights (PyTorch parity).
    out, attn_w = gqa_forward(params, query, key, value, num_query_heads, num_kv_heads)
    out = jax.block_until_ready(out)
    attn_w = jax.block_until_ready(attn_w)
    ref_out, ref_attn = gqa_reference(params, query, key, value,
                                      num_query_heads, num_kv_heads)
    assert out.shape == (B, S, d_model)
    assert attn_w.shape == (B, num_query_heads, S, S)
    assert jnp.allclose(out, ref_out, atol=3e-2, rtol=3e-2), "gqa output mismatch"
    assert jnp.allclose(attn_w, ref_attn, atol=3e-2, rtol=3e-2), "gqa weights mismatch"

    # (5) Self-attention fast path (fused QKV GEMM).
    out_s, attn_s = gqa_forward(params, query, query, query,
                                num_query_heads, num_kv_heads)
    out_s = jax.block_until_ready(out_s)
    attn_s = jax.block_until_ready(attn_s)
    ref_out_s, ref_attn_s = gqa_reference(params, query, query, query,
                                          num_query_heads, num_kv_heads)
    assert jnp.allclose(out_s, ref_out_s, atol=3e-2, rtol=3e-2), "self-attn output mismatch"
    assert jnp.allclose(attn_s, ref_attn_s, atol=3e-2, rtol=3e-2), "self-attn weights mismatch"

    # (6) Production path: flash attention, no weights materialized.
    out_f, w_none = gqa_forward(params, query, key, value,
                                num_query_heads, num_kv_heads, return_weights=False)
    out_f = jax.block_until_ready(out_f)
    assert w_none is None
    assert jnp.allclose(out_f, ref_out, atol=3e-2, rtol=3e-2), "flash gqa output mismatch"

    print("KERNEL_OK")
</pallas_src>

<mosaic_0001>
module attributes {stable_mosaic.version = 11 : i64} {
  func.func @_linear_kernel(%arg0: i32, %arg1: i32, %arg2: i32, %arg3: memref<128x256xbf16, #tpu.memory_space<vmem>>, %arg4: memref<256x128xbf16, #tpu.memory_space<vmem>>, %arg5: memref<128x128xf32, #tpu.memory_space<vmem>>, %arg6: memref<128x128xf32, #tpu.memory_space<vmem>>) attributes {dimension_semantics = [#tpu.dimension_semantics<parallel>, #tpu.dimension_semantics<parallel>, #tpu.dimension_semantics<arbitrary>], iteration_bounds = array<i64: 2, 3, 2>, scalar_prefetch = 0 : i64, scratch_operands = 1 : i64, tpu.core_type = #tpu.core_type<tc>, window_params = [{transform_indices = @transform_0, window_bounds = array<i64: 128, 256>}, {transform_indices = @transform_1, window_bounds = array<i64: 256, 128>}, {transform_indices = @transform_2, window_bounds = array<i64: 128, 128>}]} {
    %c0_i32 = arith.constant 0 : i32
    %0 = arith.cmpi eq, %arg2, %c0_i32 : i32
    %1 = arith.extui %0 : i1 to i32
    %c0_i32_0 = arith.constant 0 : i32
    %2 = arith.cmpi ne, %1, %c0_i32_0 : i32
    scf.if %2 {
      %cst_9 = arith.constant 0.000000e+00 : f32
      %12 = vector.broadcast %cst_9 : f32 to vector<128x128xf32>
      %c0_10 = arith.constant 0 : index
      %c0_11 = arith.constant 0 : index
      %13 = vector.load %arg6[%c0_10, %c0_11] : memref<128x128xf32, #tpu.memory_space<vmem>>, vector<128x128xf32>
      tpu.vector_store %arg6[%c0_10, %c0_11], %12 {strides = array<i32>} : memref<128x128xf32, #tpu.memory_space<vmem>>, vector<128x128xf32>,
    } else {
    }
    %c0 = arith.constant 0 : index
    %c0_1 = arith.constant 0 : index
    %3 = vector.load %arg6[%c0, %c0_1] : memref<128x128xf32, #tpu.memory_space<vmem>>, vector<128x128xf32>
    %c0_2 = arith.constant 0 : index
    %c0_3 = arith.constant 0 : index
    %4 = vector.load %arg3[%c0_2, %c0_3] : memref<128x256xbf16, #tpu.memory_space<vmem>>, vector<128x256xbf16>
    %c0_4 = arith.constant 0 : index
    %c0_5 = arith.constant 0 : index
    %5 = vector.load %arg4[%c0_4, %c0_5] : memref<256x128xbf16, #tpu.memory_space<vmem>>, vector<256x128xbf16>
    %cst = arith.constant dense<0.000000e+00> : vector<128x128xf32>
    %6 = tpu.matmul %4, %5, %cst {dimension_numbers = #tpu.dot_dimension_numbers<[1], [0], [0], [1], [0, 0, 1, 1], [], []>} : vector<128x256xbf16>, vector<256x128xbf16>, vector<128x128xf32> -> vector<128x128xf32>
    %7 = arith.addf %3, %6 : vector<128x128xf32>
    %c0_6 = arith.constant 0 : index
    %c0_7 = arith.constant 0 : index
    %8 = vector.load %arg6[%c0_6, %c0_7] : memref<128x128xf32, #tpu.memory_space<vmem>>, vector<128x128xf32>
    tpu.vector_store %arg6[%c0_6, %c0_7], %7 {strides = array<i32>} : memref<128x128xf32, #tpu.memory_space<vmem>>, vector<128x128xf32>,
    %c1_i32 = arith.constant 1 : i32
    %9 = arith.cmpi eq, %arg2, %c1_i32 : i32
    %10 = arith.extui %9 : i1 to i32
    %c0_i32_8 = arith.constant 0 : i32
    %11 = arith.cmpi ne, %10, %c0_i32_8 : i32
    scf.if %11 {
      %c0_9 = arith.constant 0 : index
      %c0_10 = arith.constant 0 : index
      %12 = vector.load %arg6[%c0_9, %c0_10] : memref<128x128xf32, #tpu.memory_space<vmem>>, vector<128x128xf32>
      %c0_11 = arith.constant 0 : index
      %c0_12 = arith.constant 0 : index
      %13 = vector.load %arg5[%c0_11, %c0_12] : memref<128x128xf32, #tpu.memory_space<vmem>>, vector<128x128xf32>
      tpu.vector_store %arg5[%c0_11, %c0_12], %12 {strides = array<i32>} : memref<128x128xf32, #tpu.memory_space<vmem>>, vector<128x128xf32>,
    } else {
    }
    return
  }
  func.func @transform_0(%arg0: i32, %arg1: i32, %arg2: i32) -> (i32, i32) {
    %c0_i32 = arith.constant 0 : i32
    return %arg0, %arg2 : i32, i32
  }
  func.func @transform_1(%arg0: i32, %arg1: i32, %arg2: i32) -> (i32, i32) {
    %c0_i32 = arith.constant 0 : i32
    return %arg2, %arg1 : i32, i32
  }
  func.func @transform_2(%arg0: i32, %arg1: i32, %arg2: i32) -> (i32, i32) {
    %c0_i32 = arith.constant 0 : i32
    return %arg0, %arg1 : i32, i32
  }
}

</mosaic_0001>

<llo_original>
// kernel: tpu_custom_call.1
$region0: #{tpu_custom_call.1}
  #allocation0 [shape = 'u32[]', space=smem, size = 0x4, offset = 0x4, fixed_abs, tag = 'smem constant byte address 0x4 - core index']
  #allocation1 [shape = 'u32[144,128]{1,0:T(1,128)}', space=vmem, size = 0x12000, scoped, tag = 'internal scratch']
  #allocation2 [shape = 'f32[128,128]{1,0:T(8,128)}', space=vmem, size = 0x10000, scoped, tag = 'scratch operand']
  %s0 = inlined_call_operand.hbm [shape: bf16[256,512], index: 0, kind: input, shape index: {}]
  %s1 = inlined_call_operand.hbm [shape: bf16[512,384], index: 1, kind: input, shape index: {}]
  %s2 = inlined_call_operand.hbm [shape: f32[256,384], index: 2, kind: output, shape index: {}]
  %s3 = sld [smem:[#allocation0]]
  $region57: #{tpu_custom_call.1} parent=0
    _
  %s5 = ssub.s32 1, %s3
  %s6 = scalar_select 0, %s5, %s3
  $region1: #{tpu_custom_call.1} parent=0
    #allocation3 [shape = 'u8[131072]{0}', space=vmem, size = 0x20000, scoped, tag = 'input window, operand 0']
    #allocation4 [shape = 's32[2]{0}', space=sflag, size = 0x8, scoped, tag = 'scoped memory for tpu_custom_call.1']
    #allocation5 [shape = 's32[2]{0}', space=sflag, size = 0x8, scoped, tag = 'scoped memory for tpu_custom_call.1']
    #allocation6 [shape = 'u8[131072]{0}', space=vmem, size = 0x20000, scoped, tag = 'input window, operand 1']
    #allocation7 [shape = 's32[2]{0}', space=sflag, size = 0x8, scoped, tag = 'scoped memory for tpu_custom_call.1']
    #allocation8 [shape = 'u8[131072]{0}', space=vmem, size = 0x20000, scoped, tag = 'output window, operand 0']
    %7 = vsyncpa [#allocation4], 0
    %s8 = scalar_lea.sflag [#allocation4], 1
    %9 = vsyncpa %s8, 0
    %10 = vsyncpa [#allocation7], 0
    %s11 = scalar_lea.sflag [#allocation7], 1
    %12 = vsyncpa %s11, 0
    %13 = vsyncpa [#allocation5], 0
    %s14 = scalar_lea.sflag [#allocation5], 1
    %15 = vsyncpa %s14, 0
    loop: start=0, step=1, limit=14
    $region2: #{tpu_custom_call.1} parent=1 // loop_pre_header
      _
    $region3: #{tpu_custom_call.1} parent=1 // loop_header
      %s17 = sphi 0, %s21
      %p18 = scmp.ge.s32.totalorder %s17, 14
      %s24 = sphi 0, %s43
      %s25 = sphi 0, %s39
      %s26 = sphi 0, %s35
      %s27 = sphi 0, %s24
      %s28 = sphi 0, %s25
      %s29 = sphi 0, %s26
      %s30 = sphi 0, %s27
      %s31 = sphi 0, %s28
      %s32 = sphi 0, %s29
      %s48 = sphi 0, %s50
      %s51 = sphi 0, %s48
      %s52 = sphi 0, %s51
      %s68 = sphi 0, %s52
      %s76 = sphi 0, %s78
      %s79 = sphi 0, %s76
      %s80 = sphi 0, %s79
      %s96 = sphi 0, %s80
      %s104 = sphi 0, %s106
      %s107 = sphi 0, %s104
      %s108 = sphi 0, %s107
      %s124 = sphi 0, %s108
    $region4: #{tpu_custom_call.1} parent=1 // loop_header_branch
      %20 = sbr.rel (%p18) target = $region8
    $region5: #{tpu_custom_call.1} parent=1 // loop_body
      %s22 = ssub.s32 %s17, 1
      %s23 = ssub.s32 %s17, 2
      %s33 = sadd.s32 1, %s26
      %p34 = scmp.ge.s32.totalorder %s33, 2
      %s35 = scalar_select %p34, 0, %s33
      %s36 = sadd.s32 1, %s25
      %s37 = scalar_select %p34, %s36, %s25
      %p38 = scmp.ge.s32.totalorder %s37, 3
      %s39 = scalar_select %p38, 0, %s37
      %s40 = sadd.s32 1, %s24
      %s41 = scalar_select %p38, %s40, %s24
      %p42 = scmp.ge.s32.totalorder %s41, 2
      %s43 = scalar_select %p42, 0, %s41
      %s44 = ssub.s32 %s24, %s43
      %s45 = ssub.s32 %s26, %s35
      %s46 = sor.u32 %s44, %s45
      %p47 = scmp.eq.s32.totalorder %s46, 0
      %s49 = sadd.s32 %s48, 1
      %s50 = scalar_select %p47, %s48, %s49
      %p53 = pneg %p47
      %p54 = scmp.eq.s32.totalorder %s17, 11
      %p55 = por %p53, %p54
      %p56 = scmp.ne.s32.totalorder %s48, %s51
      %p57 = scmp.eq.s32.totalorder %s17, 0
      %p58 = por %p56, %p57
      %p59 = scmp.ne.s32.totalorder %s48, %s51
      %p60 = scmp.eq.s32.totalorder %s22, 11
      %p61 = por %p59, %p60
      %p62 = scmp.ne.s32.totalorder %s51, %s52
      %p63 = scmp.eq.s32.totalorder %s22, 0
      %p64 = por %p62, %p63
      %p65 = scmp.ne.s32.totalorder %s51, %s52
      %p66 = scmp.eq.s32.totalorder %s23, 11
      %p67 = por %p65, %p66
      %p69 = scmp.ne.s32.totalorder %s52, %s68
      %p70 = scmp.eq.s32.totalorder %s23, 0
      %p71 = por %p69, %p70
      %s72 = ssub.s32 %s26, %s35
      %s73 = ssub.s32 %s25, %s39
      %s74 = sor.u32 %s72, %s73
      %p75 = scmp.eq.s32.totalorder %s74, 0
      %s77 = sadd.s32 %s76, 1
      %s78 = scalar_select %p75, %s76, %s77
      %p81 = pneg %p75
      %p82 = scmp.eq.s32.totalorder %s17, 11
      %p83 = por %p81, %p82
      %p84 = scmp.ne.s32.totalorder %s76, %s79
      %p85 = scmp.eq.s32.totalorder %s17, 0
      %p86 = por %p84, %p85
      %p87 = scmp.ne.s32.totalorder %s76, %s79
      %p88 = scmp.eq.s32.totalorder %s22, 11
      %p89 = por %p87, %p88
      %p90 = scmp.ne.s32.totalorder %s79, %s80
      %p91 = scmp.eq.s32.totalorder %s22, 0
      %p92 = por %p90, %p91
      %p93 = scmp.ne.s32.totalorder %s79, %s80
      %p94 = scmp.eq.s32.totalorder %s23, 11
      %p95 = por %p93, %p94
      %p97 = scmp.ne.s32.totalorder %s80, %s96
      %p98 = scmp.eq.s32.totalorder %s23, 0
      %p99 = por %p97, %p98
      %s100 = ssub.s32 %s24, %s43
      %s101 = ssub.s32 %s25, %s39
      %s102 = sor.u32 %s100, %s101
      %p103 = scmp.eq.s32.totalorder %s102, 0
      %s105 = sadd.s32 %s104, 1
      %s106 = scalar_select %p103, %s104, %s105
      %p109 = pneg %p103
      %p110 = scmp.eq.s32.totalorder %s17, 11
      %p111 = por %p109, %p110
      %p112 = scmp.ne.s32.totalorder %s104, %s107
      %p113 = scmp.eq.s32.totalorder %s17, 0
      %p114 = por %p112, %p113
      %p115 = scmp.ne.s32.totalorder %s104, %s107
      %p116 = scmp.eq.s32.totalorder %s22, 11
      %p117 = por %p115, %p116
      %p118 = scmp.ne.s32.totalorder %s107, %s108
      %p119 = scmp.eq.s32.totalorder %s22, 0
      %p120 = por %p118, %p119
      %p121 = scmp.ne.s32.totalorder %s107, %s108
      %p122 = scmp.eq.s32.totalorder %s23, 11
      %p123 = por %p121, %p122
      %p125 = scmp.ne.s32.totalorder %s108, %s124
      %p126 = scmp.eq.s32.totalorder %s23, 0
      %p127 = por %p125, %p126
      %p128 = scmp.le.s32.totalorder 1, %s17
      %p129 = scmp.lt.s32.totalorder %s17, 13
      %p130 = pnand %p128, %p129
      %p131 = pneg %p130
      // Predicated region
      $region9: #{tpu_custom_call.1} parent=5 // pred_check
        _
      $region10: #{tpu_custom_call.1} parent=5 // pred_check_branch
        %133 = sbr.rel (%p130) target = $region12
      $region11: #{tpu_custom_call.1} parent=5 // pred_region
        %s134 = ssub.s32 %s17, 1
      $region12: #{tpu_custom_call.1} parent=5 // pred_fallthru
        _
      %p135 = scmp.lt.s32.totalorder %s17, 12
      // Predicated region
      $region13: #{tpu_custom_call.1} parent=5 // pred_check
        %p136 = pneg %p135
      $region14: #{tpu_custom_call.1} parent=5 // pred_check_branch
        %138 = sbr.rel (%p136) target = $region16
      $region15: #{tpu_custom_call.1} parent=5 // pred_region
        // Predicated region
        $region17: #{tpu_custom_call.1} parent=15 // pred_check
          %p139 = pneg %p58
        $region18: #{tpu_custom_call.1} parent=15 // pred_check_branch
          %141 = sbr.rel (%p139) target = $region20
        $region19: #{tpu_custom_call.1} parent=15 // pred_region
          %s142 = sand.u32 %s48, 1
          %s143 = scalar_lea.sflag [#allocation4], %s142
          %s144 = sand.u32 %s48, 1
          %s145 = smul.addr %s144, 128
          %s146 = scalar_lea.vmem [#allocation3], %s145
          %s147 = smul.u32 16, %s24
          %s148 = smul.u32 2, %s26
          %s150 = ssub.s32 2048, 2048
          %151 = vsyncadd %s143, %s150
          %s152 = smul.addr %s147, 4
          %s153 = sadd.s32 %s148, %s152
          %s154 = smul.addr %s153, 64
          %s155 = scalar_lea.hbm %s0, %s154
          %s156 = sshll.u32 %s146, 4
          %s157 = int_to_ptr.vmem [resolvable:$true] %s156
          %162 = dma.hbm_to_vmem [thread:$0]  %s155, 2048, %s157, %s143, 256, 128, 8
        $region20: #{tpu_custom_call.1} parent=15 // pred_fallthru
          _
        // Predicated region
        $region21: #{tpu_custom_call.1} parent=15 // pred_check
          %p163 = pneg %p86
        $region22: #{tpu_custom_call.1} parent=15 // pred_check_branch
          %165 = sbr.rel (%p163) target = $region24
        $region23: #{tpu_custom_call.1} parent=15 // pred_region
          %s166 = sand.u32 %s76, 1
          %s167 = scalar_lea.sflag [#allocation7], %s166
          %s168 = sand.u32 %s76, 1
          %s169 = smul.addr %s168, 128
          %s170 = scalar_lea.vmem [#allocation6], %s169
          %s171 = smul.u32 32, %s26
          %s173 = ssub.s32 2048, 2048
          %174 = vsyncadd %s167, %s173
          %s175 = smul.addr %s171, 3
          %s176 = sadd.s32 %s25, %s175
          %s177 = smul.addr %s176, 64
          %s178 = scalar_lea.hbm %s1, %s177
          %s179 = sshll.u32 %s170, 4
          %s180 = int_to_ptr.vmem [resolvable:$true] %s179
          %185 = dma.hbm_to_vmem [thread:$0]  %s178, 2048, %s180, %s167, 192, 64, 4
        $region24: #{tpu_custom_call.1} parent=15 // pred_fallthru
          _
      $region16: #{tpu_custom_call.1} parent=5 // pred_fallthru
        _
      %p186 = scmp.le.s32.totalorder 1, %s17
      %p187 = scmp.lt.s32.totalorder %s17, 13
      %p188 = pnand %p186, %p187
      %p189 = pneg %p188
      // Predicated region
      $region25: #{tpu_custom_call.1} parent=5 // pred_check
        _
      $region26: #{tpu_custom_call.1} parent=5 // pred_check_branch
        %191 = sbr.rel (%p188) target = $region28
      $region27: #{tpu_custom_call.1} parent=5 // pred_region
        %s192 = ssub.s32 %s17, 1
        %s193 = sand.u32 %s51, 1
        %s194 = scalar_lea.sflag [#allocation4], %s193
        %s195 = sand.u32 %s51, 1
        %s196 = smul.addr %s195, 128
        %s197 = scalar_lea.vmem [#allocation3], %s196
        // Predicated region
        $region29: #{tpu_custom_call.1} parent=27 // pred_check
          %p198 = pneg %p64
        $region30: #{tpu_custom_call.1} parent=27 // pred_check_branch
          %200 = sbr.rel (%p198) target = $region32
        $region31: #{tpu_custom_call.1} parent=27 // pred_region
          %201 = dma.done %s194, 2048
        $region32: #{tpu_custom_call.1} parent=27 // pred_fallthru
          _
        %s202 = sand.u32 %s79, 1
        %s203 = scalar_lea.sflag [#allocation7], %s202
        %s204 = sand.u32 %s79, 1
        %s205 = smul.addr %s204, 128
        %s206 = scalar_lea.vmem [#allocation6], %s205
        // Predicated region
        $region33: #{tpu_custom_call.1} parent=27 // pred_check
          %p207 = pneg %p92
        $region34: #{tpu_custom_call.1} parent=27 // pred_check_branch
          %209 = sbr.rel (%p207) target = $region36
        $region35: #{tpu_custom_call.1} parent=27 // pred_region
          %210 = dma.done %s203, 2048
        $region36: #{tpu_custom_call.1} parent=27 // pred_fallthru
          _
        %s211 = sand.u32 %s51, 1
        %s212 = scalar_lea.sflag [#allocation4], %s211
        %s213 = sand.u32 %s51, 1
        %s214 = smul.addr %s213, 128
        %s215 = scalar_lea.vmem [#allocation3], %s214
        %p216 = pneg %p64
        %p217 = pneg %p61
        %s218 = sand.u32 %s79, 1
        %s219 = scalar_lea.sflag [#allocation7], %s218
        %s220 = sand.u32 %s79, 1
        %s221 = smul.addr %s220, 128
        %s222 = scalar_lea.vmem [#allocation6], %s221
        %p223 = pneg %p92
        %p224 = pneg %p89
        %p225 = pneg %p120
        %p226 = pneg %p117
        %s227 = sand.u32 %s107, 1
        %s228 = scalar_lea.sflag [#allocation5], %s227
        %s229 = sand.u32 %s107, 1
        %s230 = smul.addr %s229, 128
        %s231 = scalar_lea.vmem [#allocation8], %s230
        %s232 = smul.u32 16, %s27
        %s233 = smul.u32 2, %s29
        %s234 = smul.u32 32, %s29
        %s235 = smul.u32 16, %s27
        %p237 = scmp.eq.s32.totalorder %s29, 0
        // Predicated region
        $region37: #{tpu_custom_call.1} parent=27 // pred_check
          %p238 = pneg %p237
        $region38: #{tpu_custom_call.1} parent=27 // pred_check_branch
          %240 = sbr.rel (%p238) target = $region40
        $region39: #{tpu_custom_call.1} parent=27 // pred_region
          %241 = vst [vmem:[#allocation2] sm:$0xff] 0.0
          %242 = vst [vmem:[#allocation2 + $0x8] sm:$0xff] 0.0
          %243 = vst [vmem:[#allocation2 + $0x10] sm:$0xff] 0.0
          %244 = vst [vmem:[#allocation2 + $0x18] sm:$0xff] 0.0
          %245 = vst [vmem:[#allocation2 + $0x20] sm:$0xff] 0.0
          %246 = vst [vmem:[#allocation2 + $0x28] sm:$0xff] 0.0
          %247 = vst [vmem:[#allocation2 + $0x30] sm:$0xff] 0.0
          %248 = vst [vmem:[#allocation2 + $0x38] sm:$0xff] 0.0
          %249 = vst [vmem:[#allocation2 + $0x40] sm:$0xff] 0.0
          %250 = vst [vmem:[#allocation2 + $0x48] sm:$0xff] 0.0
          %251 = vst [vmem:[#allocation2 + $0x50] sm:$0xff] 0.0
          %252 = vst [vmem:[#allocation2 + $0x58] sm:$0xff] 0.0
          %253 = vst [vmem:[#allocation2 + $0x60] sm:$0xff] 0.0
          %254 = vst [vmem:[#allocation2 + $0x68] sm:$0xff] 0.0
          %255 = vst [vmem:[#allocation2 + $0x70] sm:$0xff] 0.0
          %256 = vst [vmem:[#allocation2 + $0x78] sm:$0xff] 0.0
        $region40: #{tpu_custom_call.1} parent=27 // pred_fallthru
          _
        %v257 = vld [vmem:[#allocation2] sm:$0xff]
        %v258 = vld [vmem:[#allocation2 + $0x8] sm:$0xff]
        %v259 = vld [vmem:[#allocation2 + $0x10] sm:$0xff]
        %v260 = vld [vmem:[#allocation2 + $0x18] sm:$0xff]
        %v261 = vld [vmem:[#allocation2 + $0x20] sm:$0xff]
        %v262 = vld [vmem:[#allocation2 + $0x28] sm:$0xff]
        %v263 = vld [vmem:[#allocation2 + $0x30] sm:$0xff]
        %v264 = vld [vmem:[#allocation2 + $0x38] sm:$0xff]
        %v265 = vld [vmem:[#allocation2 + $0x40] sm:$0xff]
        %v266 = vld [vmem:[#allocation2 + $0x48] sm:$0xff]
        %v267 = vld [vmem:[#allocation2 + $0x50] sm:$0xff]
        %v268 = vld [vmem:[#allocation2 + $0x58] sm:$0xff]
        %v269 = vld [vmem:[#allocation2 + $0x60] sm:$0xff]
        %v270 = vld [vmem:[#allocation2 + $0x68] sm:$0xff]
        %v271 = vld [vmem:[#allocation2 + $0x70] sm:$0xff]
        %v272 = vld [vmem:[#allocation2 + $0x78] sm:$0xff]
        %v273 = vld [vmem:[%s197] sm:$0xff]
        %v274 = vld [vmem:[%s197 + $0x8] sm:$0xff]
        %v275 = vld [vmem:[%s197 + $0x10] sm:$0xff]
        %v276 = vld [vmem:[%s197 + $0x18] sm:$0xff]
        %v277 = vld [vmem:[%s197 + $0x20] sm:$0xff]
        %v278 = vld [vmem:[%s197 + $0x28] sm:$0xff]
        %v279 = vld [vmem:[%s197 + $0x30] sm:$0xff]
        %v280 = vld [vmem:[%s197 + $0x38] sm:$0xff]
        %v281 = vld [vmem:[%s197 + $0x40] sm:$0xff]
        %v282 = vld [vmem:[%s197 + $0x48] sm:$0xff]
        %v283 = vld [vmem:[%s197 + $0x50] sm:$0xff]
        %v284 = vld [vmem:[%s197 + $0x58] sm:$0xff]
        %v285 = vld [vmem:[%s197 + $0x60] sm:$0xff]
        %v286 = vld [vmem:[%s197 + $0x68] sm:$0xff]
        %v287 = vld [vmem:[%s197 + $0x70] sm:$0xff]
        %v288 = vld [vmem:[%s197 + $0x78] sm:$0xff]
        %v289 = vld [vmem:[%s206] sm:$0xf]
        %v290 = vld [vmem:[%s206 + $0x4] sm:$0xf]
        %v291 = vld [vmem:[%s206 + $0x8] sm:$0xf]
        %v292 = vld [vmem:[%s206 + $0xc] sm:$0xf]
        %v293 = vld [vmem:[%s206 + $0x10] sm:$0xf]
        %v294 = vld [vmem:[%s206 + $0x14] sm:$0xf]
        %v295 = vld [vmem:[%s206 + $0x18] sm:$0xf]
        %v296 = vld [vmem:[%s206 + $0x1c] sm:$0xf]
        %v297 = vld [vmem:[%s206 + $0x20] sm:$0xf]
        %v298 = vld [vmem:[%s206 + $0x24] sm:$0xf]
        %v299 = vld [vmem:[%s206 + $0x28] sm:$0xf]
        %v300 = vld [vmem:[%s206 + $0x2c] sm:$0xf]
        %v301 = vld [vmem:[%s206 + $0x30] sm:$0xf]
        %v302 = vld [vmem:[%s206 + $0x34] sm:$0xf]
        %v303 = vld [vmem:[%s206 + $0x38] sm:$0xf]
        %v304 = vld [vmem:[%s206 + $0x3c] sm:$0xf]
        %v305 = vld [vmem:[%s206 + $0x40] sm:$0xf]
        %v306 = vld [vmem:[%s206 + $0x44] sm:$0xf]
        %v307 = vld [vmem:[%s206 + $0x48] sm:$0xf]
        %v308 = vld [vmem:[%s206 + $0x4c] sm:$0xf]
        %v309 = vld [vmem:[%s206 + $0x50] sm:$0xf]
        %v310 = vld [vmem:[%s206 + $0x54] sm:$0xf]
        %v311 = vld [vmem:[%s206 + $0x58] sm:$0xf]
        %v312 = vld [vmem:[%s206 + $0x5c] sm:$0xf]
        %v313 = vld [vmem:[%s206 + $0x60] sm:$0xf]
        %v314 = vld [vmem:[%s206 + $0x64] sm:$0xf]
        %v315 = vld [vmem:[%s206 + $0x68] sm:$0xf]
        %v316 = vld [vmem:[%s206 + $0x6c] sm:$0xf]
        %v317 = vld [vmem:[%s206 + $0x70] sm:$0xf]
        %v318 = vld [vmem:[%s206 + $0x74] sm:$0xf]
        %v319 = vld [vmem:[%s206 + $0x78] sm:$0xf]
        %v320 = vld [vmem:[%s206 + $0x7c] sm:$0xf]
        %v337 = vunpack.c.l.b16 %v273
        %v338 = vunpack.c.h.b16 %v273
        %v339 = vunpack.c.l.b16 %v274
        %v340 = vunpack.c.h.b16 %v274
        %v341 = vunpack.c.l.b16 %v275
        %v342 = vunpack.c.h.b16 %v275
        %v343 = vunpack.c.l.b16 %v276
        %v344 = vunpack.c.h.b16 %v276
        %v345 = vunpack.c.l.b16 %v277
        %v346 = vunpack.c.h.b16 %v277
        %v347 = vunpack.c.l.b16 %v278
        %v348 = vunpack.c.h.b16 %v278
        %v349 = vunpack.c.l.b16 %v279
        %v350 = vunpack.c.h.b16 %v279
        %v351 = vunpack.c.l.b16 %v280
        %v352 = vunpack.c.h.b16 %v280
        %v353 = vunpack.c.l.b16 %v281
        %v354 = vunpack.c.h.b16 %v281
        %v355 = vunpack.c.l.b16 %v282
        %v356 = vunpack.c.h.b16 %v282
        %v357 = vunpack.c.l.b16 %v283
        %v358 = vunpack.c.h.b16 %v283
        %v359 = vunpack.c.l.b16 %v284
        %v360 = vunpack.c.h.b16 %v284
        %v361 = vunpack.c.l.b16 %v285
        %v362 = vunpack.c.h.b16 %v285
        %v363 = vunpack.c.l.b16 %v286
        %v364 = vunpack.c.h.b16 %v286
        %v365 = vunpack.c.l.b16 %v287
        %v366 = vunpack.c.h.b16 %v287
        %v367 = vunpack.c.l.b16 %v288
        %v368 = vunpack.c.h.b16 %v288
        %v369 = vpack.c.b16 %v339, %v337
        %v370 = vpack.c.b16 %v340, %v338
        %v371 = vpack.c.b16 %v343, %v341
        %v372 = vpack.c.b16 %v344, %v342
        %v373 = vpack.c.b16 %v347, %v345
        %v374 = vpack.c.b16 %v348, %v346
        %v375 = vpack.c.b16 %v351, %v349
        %v376 = vpack.c.b16 %v352, %v350
        %v377 = vpack.c.b16 %v355, %v353
        %v378 = vpack.c.b16 %v356, %v354
        %v379 = vpack.c.b16 %v359, %v357
        %v380 = vpack.c.b16 %v360, %v358
        %v381 = vpack.c.b16 %v363, %v361
        %v382 = vpack.c.b16 %v364, %v362
        %v383 = vpack.c.b16 %v367, %v365
        %v384 = vpack.c.b16 %v368, %v366
        %v433 = vunpack.c.l.b16 %v289
        %v434 = vunpack.c.l.b16 %v290
        %v435 = vunpack.c.l.b16 %v291
        %v436 = vunpack.c.l.b16 %v292
        %v437 = vunpack.c.l.b16 %v293
        %v438 = vunpack.c.l.b16 %v294
        %v439 = vunpack.c.l.b16 %v295
        %v440 = vunpack.c.l.b16 %v296
        %v441 = vunpack.c.l.b16 %v297
        %v442 = vunpack.c.l.b16 %v298
        %v443 = vunpack.c.l.b16 %v299
        %v444 = vunpack.c.l.b16 %v300
        %v445 = vunpack.c.l.b16 %v301
        %v446 = vunpack.c.l.b16 %v302
        %v447 = vunpack.c.l.b16 %v303
        %v448 = vunpack.c.l.b16 %v304
        %v449 = vunpack.c.l.b16 %v305
        %v450 = vunpack.c.l.b16 %v306
        %v451 = vunpack.c.l.b16 %v307
        %v452 = vunpack.c.l.b16 %v308
        %v453 = vunpack.c.l.b16 %v309
        %v454 = vunpack.c.l.b16 %v310
        %v455 = vunpack.c.l.b16 %v311
        %v456 = vunpack.c.l.b16 %v312
        %v457 = vunpack.c.l.b16 %v313
        %v458 = vunpack.c.l.b16 %v314
        %v459 = vunpack.c.l.b16 %v315
        %v460 = vunpack.c.l.b16 %v316
        %v461 = vunpack.c.l.b16 %v317
        %v462 = vunpack.c.l.b16 %v318
        %v463 = vunpack.c.l.b16 %v319
        %v464 = vunpack.c.l.b16 %v320
        %v465 = vpack.c.b16 %v434, %v433
        %v466 = vpack.c.b16 %v436, %v435
        %v467 = vpack.c.b16 %v438, %v437
        %v468 = vpack.c.b16 %v440, %v439
        %v469 = vpack.c.b16 %v442, %v441
        %v470 = vpack.c.b16 %v444, %v443
        %v471 = vpack.c.b16 %v446, %v445
        %v472 = vpack.c.b16 %v448, %v447
        %v473 = vpack.c.b16 %v450, %v449
        %v474 = vpack.c.b16 %v452, %v451
        %v475 = vpack.c.b16 %v454, %v453
        %v476 = vpack.c.b16 %v456, %v455
        %v477 = vpack.c.b16 %v458, %v457
        %v478 = vpack.c.b16 %v460, %v459
        %v479 = vpack.c.b16 %v462, %v461
        %v480 = vpack.c.b16 %v464, %v463
        %497 = vmatprep.subr.bf16.mxu0 0
        %498 = vmatpush1.bf16.msra.mxu0 %v465
        %499 = vmatprep.subr.bf16.mxu0 0
        %500 = vmatpush1.bf16.msra.mxu0 %v466
        %501 = vmatprep.subr.bf16.mxu0 0
        %502 = vmatpush1.bf16.msra.mxu0 %v467
        %503 = vmatprep.subr.bf16.mxu0 0
        %504 = vmatpush1.bf16.msra.mxu0 %v468
        %505 = vmatprep.subr.bf16.mxu0 0
        %506 = vmatpush1.bf16.msra.mxu0 %v469
        %507 = vmatprep.subr.bf16.mxu0 0
        %508 = vmatpush1.bf16.msra.mxu0 %v470
        %509 = vmatprep.subr.bf16.mxu0 0
        %510 = vmatpush1.bf16.msra.mxu0 %v471
        %511 = vmatprep.subr.bf16.mxu0 0
        %512 = vmatpush1.bf16.msra.mxu0 %v472
        %513 = vmatprep.subr.bf16.mxu0 0
        %514 = vmatpush1.bf16.msra.mxu0 %v473
        %515 = vmatprep.subr.bf16.mxu0 0
        %516 = vmatpush1.bf16.msra.mxu0 %v474
        %517 = vmatprep.subr.bf16.mxu0 0
        %518 = vmatpush1.bf16.msra.mxu0 %v475
        %519 = vmatprep.subr.bf16.mxu0 0
        %520 = vmatpush1.bf16.msra.mxu0 %v476
        %521 = vmatprep.subr.bf16.mxu0 0
        %522 = vmatpush1.bf16.msra.mxu0 %v477
        %523 = vmatprep.subr.bf16.mxu0 0
        %524 = vmatpush1.bf16.msra.mxu0 %v478
        %525 = vmatprep.subr.bf16.mxu0 0
        %526 = vmatpush1.bf16.msra.mxu0 %v479
        %527 = vmatprep.subr.bf16.mxu0 0
        %528 = vmatpush1.bf16.msra.mxu0 %v480
        %529 = vmatprep.mubr.bf16.mxu0 %v370
        %530 = vmatmul.mubr.bf16.gmra.mrb[0].mxu0 %v369
        %v531 = vpop.f32.mrb[0].mxu0
        %v532 = vadd.f32 0.0, %v531
        %v533 = vpop.f32.mrb[0].mxu0
        %v534 = vpop.f32.mrb[0].mxu0
        %v535 = vadd.f32 0.0, %v534
        %v536 = vpop.f32.mrb[0].mxu0
        %537 = vmatprep.mubr.bf16.mxu0 %v372
        %538 = vmatmul.mubr.bf16.gmra.mrb[0].mxu0 %v371
        %v539 = vpop.f32.mrb[0].mxu0
        %v540 = vadd.f32 0.0, %v539
        %v541 = vpop.f32.mrb[0].mxu0
        %v542 = vpop.f32.mrb[0].mxu0
        %v543 = vadd.f32 0.0, %v542
        %v544 = vpop.f32.mrb[0].mxu0
        %545 = vmatprep.mubr.bf16.mxu0 %v374
        %546 = vmatmul.mubr.bf16.gmra.mrb[0].mxu0 %v373
        %v547 = vpop.f32.mrb[0].mxu0
        %v548 = vadd.f32 0.0, %v547
        %v549 = vpop.f32.mrb[0].mxu0
        %v550 = vpop.f32.mrb[0].mxu0
        %v551 = vadd.f32 0.0, %v550
        %v552 = vpop.f32.mrb[0].mxu0
        %553 = vmatprep.mubr.bf16.mxu0 %v376
        %554 = vmatmul.mubr.bf16.gmra.mrb[0].mxu0 %v375
        %v555 = vpop.f32.mrb[0].mxu0
        %v556 = vadd.f32 0.0, %v555
        %v557 = vpop.f32.mrb[0].mxu0
        %v558 = vpop.f32.mrb[0].mxu0
        %v559 = vadd.f32 0.0, %v558
        %v560 = vpop.f32.mrb[0].mxu0
        %561 = vmatprep.mubr.bf16.mxu0 %v378
        %562 = vmatmul.mubr.bf16.gmra.mrb[0].mxu0 %v377
        %v563 = vpop.f32.mrb[0].mxu0
        %v564 = vadd.f32 0.0, %v563
        %v565 = vpop.f32.mrb[0].mxu0
        %v566 = vpop.f32.mrb[0].mxu0
        %v567 = vadd.f32 0.0, %v566
        %v568 = vpop.f32.mrb[0].mxu0
        %569 = vmatprep.mubr.bf16.mxu0 %v380
        %570 = vmatmul.mubr.bf16.gmra.mrb[0].mxu0 %v379
        %v571 = vpop.f32.mrb[0].mxu0
        %v572 = vadd.f32 0.0, %v571
        %v573 = vpop.f32.mrb[0].mxu0
        %v574 = vpop.f32.mrb[0].mxu0
        %v575 = vadd.f32 0.0, %v574
        %v576 = vpop.f32.mrb[0].mxu0
        %577 = vmatprep.mubr.bf16.mxu0 %v382
        %578 = vmatmul.mubr.bf16.gmra.mrb[0].mxu0 %v381
        %v579 = vpop.f32.mrb[0].mxu0
        %v580 = vadd.f32 0.0, %v579
        %v581 = vpop.f32.mrb[0].mxu0
        %v582 = vpop.f32.mrb[0].mxu0
        %v583 = vadd.f32 0.0, %v582
        %v584 = vpop.f32.mrb[0].mxu0
        %585 = vmatprep.mubr.bf16.mxu0 %v384
        %586 = vmatmul.mubr.bf16.gmra.mrb[0].mxu0 %v383
        %v587 = vpop.f32.mrb[0].mxu0
        %v588 = vadd.f32 0.0, %v587
        %v589 = vpop.f32.mrb[0].mxu0
        %v590 = vpop.f32.mrb[0].mxu0
        %v591 = vadd.f32 0.0, %v590
        %v592 = vpop.f32.mrb[0].mxu0
        %593 = vdwg.mxu0
        %v594 = vadd.f32 %v257, %v532
        %v595 = vadd.f32 %v258, %v535
        %v596 = vadd.f32 %v259, %v540
        %v597 = vadd.f32 %v260, %v543
        %v598 = vadd.f32 %v261, %v548
        %v599 = vadd.f32 %v262, %v551
        %v600 = vadd.f32 %v263, %v556
        %v601 = vadd.f32 %v264, %v559
        %v602 = vadd.f32 %v265, %v564
        %v603 = vadd.f32 %v266, %v567
        %v604 = vadd.f32 %v267, %v572
        %v605 = vadd.f32 %v268, %v575
        %v606 = vadd.f32 %v269, %v580
        %v607 = vadd.f32 %v270, %v583
        %v608 = vadd.f32 %v271, %v588
        %v609 = vadd.f32 %v272, %v591
        %610 = vst [vmem:[#allocation2] sm:$0xff] %v594
        %611 = vst [vmem:[#allocation2 + $0x8] sm:$0xff] %v595
        %612 = vst [vmem:[#allocation2 + $0x10] sm:$0xff] %v596
        %613 = vst [vmem:[#allocation2 + $0x18] sm:$0xff] %v597
        %614 = vst [vmem:[#allocation2 + $0x20] sm:$0xff] %v598
        %615 = vst [vmem:[#allocation2 + $0x28] sm:$0xff] %v599
        %616 = vst [vmem:[#allocation2 + $0x30] sm:$0xff] %v600
        %617 = vst [vmem:[#allocation2 + $0x38] sm:$0xff] %v601
        %618 = vst [vmem:[#allocation2 + $0x40] sm:$0xff] %v602
        %619 = vst [vmem:[#allocation2 + $0x48] sm:$0xff] %v603
        %620 = vst [vmem:[#allocation2 + $0x50] sm:$0xff] %v604
        %621 = vst [vmem:[#allocation2 + $0x58] sm:$0xff] %v605
        %622 = vst [vmem:[#allocation2 + $0x60] sm:$0xff] %v606
        %623 = vst [vmem:[#allocation2 + $0x68] sm:$0xff] %v607
        %624 = vst [vmem:[#allocation2 + $0x70] sm:$0xff] %v608
        %625 = vst [vmem:[#allocation2 + $0x78] sm:$0xff] %v609
        %p626 = scmp.eq.s32.totalorder %s29, 1
        // Predicated region
        $region41: #{tpu_custom_call.1} parent=27 // pred_check
          %p627 = pneg %p626
        $region42: #{tpu_custom_call.1} parent=27 // pred_check_branch
          %629 = sbr.rel (%p627) target = $region44
        $region43: #{tpu_custom_call.1} parent=27 // pred_region
          %v630 = vld [vmem:[#allocation2] sm:$0xff]
          %v631 = vld [vmem:[#allocation2 + $0x8] sm:$0xff]
          %v632 = vld [vmem:[#allocation2 + $0x10] sm:$0xff]
          %v633 = vld [vmem:[#allocation2 + $0x18] sm:$0xff]
          %v634 = vld [vmem:[#allocation2 + $0x20] sm:$0xff]
          %v635 = vld [vmem:[#allocation2 + $0x28] sm:$0xff]
          %v636 = vld [vmem:[#allocation2 + $0x30] sm:$0xff]
          %v637 = vld [vmem:[#allocation2 + $0x38] sm:$0xff]
          %v638 = vld [vmem:[#allocation2 + $0x40] sm:$0xff]
          %v639 = vld [vmem:[#allocation2 + $0x48] sm:$0xff]
          %v640 = vld [vmem:[#allocation2 + $0x50] sm:$0xff]
          %v641 = vld [vmem:[#allocation2 + $0x58] sm:$0xff]
          %v642 = vld [vmem:[#allocation2 + $0x60] sm:$0xff]
          %v643 = vld [vmem:[#allocation2 + $0x68] sm:$0xff]
          %v644 = vld [vmem:[#allocation2 + $0x70] sm:$0xff]
          %v645 = vld [vmem:[#allocation2 + $0x78] sm:$0xff]
          %646 = vst [vmem:[%s231] sm:$0xff] %v630
          %647 = vst [vmem:[%s231 + $0x8] sm:$0xff] %v631
          %648 = vst [vmem:[%s231 + $0x10] sm:$0xff] %v632
          %649 = vst [vmem:[%s231 + $0x18] sm:$0xff] %v633
          %650 = vst [vmem:[%s231 + $0x20] sm:$0xff] %v634
          %651 = vst [vmem:[%s231 + $0x28] sm:$0xff] %v635
          %652 = vst [vmem:[%s231 + $0x30] sm:$0xff] %v636
          %653 = vst [vmem:[%s231 + $0x38] sm:$0xff] %v637
          %654 = vst [vmem:[%s231 + $0x40] sm:$0xff] %v638
          %655 = vst [vmem:[%s231 + $0x48] sm:$0xff] %v639
          %656 = vst [vmem:[%s231 + $0x50] sm:$0xff] %v640
          %657 = vst [vmem:[%s231 + $0x58] sm:$0xff] %v641
          %658 = vst [vmem:[%s231 + $0x60] sm:$0xff] %v642
          %659 = vst [vmem:[%s231 + $0x68] sm:$0xff] %v643
          %660 = vst [vmem:[%s231 + $0x70] sm:$0xff] %v644
          %661 = vst [vmem:[%s231 + $0x78] sm:$0xff] %v645
        $region44: #{tpu_custom_call.1} parent=27 // pred_fallthru
          _
        %s662 = sand.u32 %s107, 1
        %s663 = scalar_lea.sflag [#allocation5], %s662
        %s664 = sand.u32 %s107, 1
        %s665 = smul.addr %s664, 128
        %s666 = scalar_lea.vmem [#allocation8], %s665
        // Predicated region
        $region45: #{tpu_custom_call.1} parent=27 // pred_check
          %p667 = pneg %p117
        $region46: #{tpu_custom_call.1} parent=27 // pred_check_branch
          %669 = sbr.rel (%p667) target = $region48
        $region47: #{tpu_custom_call.1} parent=27 // pred_region
          %s670 = smul.u32 16, %s27
          %s672 = ssub.s32 2048, 2048
          %673 = vsyncadd %s663, %s672
          %s674 = smul.addr %s670, 3
          %s675 = sadd.s32 %s28, %s674
          %s676 = smul.addr %s675, 128
          %s677 = scalar_lea.hbm %s2, %s676
          %s678 = sshll.u32 %s666, 4
          %s679 = int_to_ptr.vmem [resolvable:$true] %s678
          %684 = dma.vmem_to_hbm [thread:$0]  %s679, 2048, %s677, %s663, 128, 384, 8
        $region48: #{tpu_custom_call.1} parent=27 // pred_fallthru
          _
      $region28: #{tpu_custom_call.1} parent=5 // pred_fallthru
        _
      %p685 = scmp.le.s32.totalorder 2, %s17
      // Predicated region
      $region49: #{tpu_custom_call.1} parent=5 // pred_check
        %p686 = pneg %p685
      $region50: #{tpu_custom_call.1} parent=5 // pred_check_branch
        %688 = sbr.rel (%p686) target = $region52
      $region51: #{tpu_custom_call.1} parent=5 // pred_region
        %s689 = ssub.s32 %s17, 2
        // Predicated region
        $region53: #{tpu_custom_call.1} parent=51 // pred_check
          %p690 = pneg %p123
        $region54: #{tpu_custom_call.1} parent=51 // pred_check_branch
          %692 = sbr.rel (%p690) target = $region56
        $region55: #{tpu_custom_call.1} parent=51 // pred_region
          %s693 = sand.u32 %s108, 1
          %s694 = scalar_lea.sflag [#allocation5], %s693
          %s695 = sand.u32 %s108, 1
          %s696 = smul.addr %s695, 128
          %s697 = scalar_lea.vmem [#allocation8], %s696
          %698 = dma.done %s694, 2048
        $region56: #{tpu_custom_call.1} parent=51 // pred_fallthru
          _
      $region52: #{tpu_custom_call.1} parent=5 // pred_fallthru
        _
    $region6: #{tpu_custom_call.1} parent=1 // loop_footer
      %s21 = sadd.s32 1, %s17
    $region7: #{tpu_custom_call.1} parent=1 // loop_footer_branch
      %16 = sbr.rel target = $region3
    $region8: #{tpu_custom_call.1} parent=1 // loop_exit
      _
    %699 = vsyncpa [#allocation4], 1
    %s700 = scalar_lea.sflag [#allocation4], 1
    %701 = vsyncpa %s700, 1
    %702 = vsyncpa [#allocation7], 1
    %s703 = scalar_lea.sflag [#allocation7], 1
    %704 = vsyncpa %s703, 1
    %705 = vsyncpa [#allocation5], 1
    %s706 = scalar_lea.sflag [#allocation5], 1
    %707 = vsyncpa %s706, 1

</llo_original>
